<compile_context>
chip_gen: v7x
topology: tpu7x:2x2x1
jax: 0.10.0
libtpu: 0.0.40
codegen_flags: <defaults>
</compile_context>

<pallas_src>
import jax
import jax.numpy as jnp
from jax.experimental import pallas as pl
from jax.experimental.pallas import tpu as pltpu


def _make_box_kernel(rx, ry):
    """Separable circular box-sum over a (PB, H, W) block, all-ones taps."""

    def kernel(x_ref, out_ref):
        x = x_ref[...].astype(jnp.float32)          # (PB, H, W), f32 accumulate
        H = x.shape[-2]
        W = x.shape[-1]

        # ---- row pass: circular sliding sum along W (no weight multiply) ----
        if ry > 0:
            xp = jnp.concatenate(
                [x[:, :, W - ry:], x, x[:, :, :ry]], axis=-1)   # (PB, H, W+2ry)
        else:
            xp = x
        row = xp[:, :, 0:W]
        for j in range(1, 2 * ry + 1):               # static, small trip count
            row = row + xp[:, :, j:j + W]

        # ---- column pass: circular sliding sum along H ----
        if rx > 0:
            rp = jnp.concatenate(
                [row[:, H - rx:, :], row, row[:, :rx, :]], axis=-2)  # (PB, H+2rx, W)
        else:
            rp = row
        acc = rp[:, 0:H, :]
        for i in range(1, 2 * rx + 1):
            acc = acc + rp[:, i:i + H, :]

        out_ref[...] = acc.astype(out_ref.dtype)

    return kernel


def box_filter(x, rx, ry, angle=0):
    """Pallas implementation of BoxFilter.forward (Angle == 0)."""
    assert angle == 0, "Angle != 0 kernel init (scipy rotate) not replicated"
    N, C, H, W = x.shape
    assert C == 1, "torch.conv2d with a (1,1,kh,kw) weight requires C == 1"
    # torch's circular pad requires pad < dim (numpy 'wrap' would silently repeat)
    assert rx < H and ry < W, "circular pad radius must be smaller than the dim"

    NC = N * C
    xr = x.reshape(NC, H, W)

    # Plane-block size: amortize per-grid-step overhead, but stay inside a
    # conservative VMEM budget and keep >= 2 grid steps when possible so both
    # TensorCores on v7x get work on the "parallel" axis.
    plane_bytes = H * W * 4                      # f32 working set per plane
    budget_bytes = 4 * 1024 * 1024               # per input block
    cap = max(1, budget_bytes // max(plane_bytes, 1))
    if NC >= 2:
        cap = min(cap, NC // 2)
    pb = 1
    for d in range(1, NC + 1):                   # largest divisor of NC <= cap
        if NC % d == 0 and d <= cap:
            pb = d

    grid = (NC // pb,)

    # Double-buffered in/out blocks + in-kernel padded intermediates; keep the
    # explicit limit <= v7x's 64 MiB physical VMEM.
    vmem_need = 12 * pb * (H + 2 * rx) * (W + 2 * ry) * 4
    vmem_limit = int(min(64 * 1024 * 1024, max(32 * 1024 * 1024, vmem_need)))

    out = pl.pallas_call(
        _make_box_kernel(rx, ry),
        out_shape=jax.ShapeDtypeStruct((NC, H, W), x.dtype),
        grid=grid,
        in_specs=[pl.BlockSpec((pb, H, W), lambda n: (n, 0, 0))],
        out_specs=pl.BlockSpec((pb, H, W), lambda n: (n, 0, 0)),
        compiler_params=pltpu.CompilerParams(
            dimension_semantics=("parallel",),
            vmem_limit_bytes=vmem_limit,
        ),
    )(xr)

    return out.reshape(N, C, H, W)


def _reference(x, rx, ry):
    # pure-JAX reference of the same semantics (verification only)
    xpad = jnp.pad(
        x.astype(jnp.float32),
        ((0, 0), (0, 0), (rx, rx), (ry, ry)),
        mode="wrap",
    )
    N, C, H, W = x.shape
    acc = jnp.zeros((N, C, H, W), jnp.float32)
    for i in range(2 * rx + 1):
        for j in range(2 * ry + 1):
            acc = acc + xpad[:, :, i:i + H, j:j + W]
    return acc


if __name__ == "__main__":
    key = jax.random.PRNGKey(0)

    # config 1: small plane, matches module constraint C == 1
    N, C, H, W = 2, 1, 16, 16
    rx, ry = 1, 2
    x = jax.random.normal(key, (N, C, H, W), dtype=jnp.float32)
    out = jax.block_until_ready(box_filter(x, rx, ry, angle=0))
    ref = _reference(x, rx, ry)
    assert out.shape == (N, C, H, W)
    assert out.dtype == x.dtype
    assert jnp.allclose(out.astype(jnp.float32), ref, atol=1e-4, rtol=1e-4), \
        "mismatch vs reference (config 1)"

    # config 2: different radii / non-square plane, exercises plane blocking
    N2, C2, H2, W2 = 3, 1, 24, 40
    rx2, ry2 = 2, 3
    x2 = jax.random.normal(jax.random.PRNGKey(0), (N2, C2, H2, W2),
                           dtype=jnp.float32)
    out2 = jax.block_until_ready(box_filter(x2, rx2, ry2, angle=0))
    ref2 = _reference(x2, rx2, ry2)
    assert out2.shape == (N2, C2, H2, W2)
    assert jnp.allclose(out2.astype(jnp.float32), ref2, atol=1e-4, rtol=1e-4), \
        "mismatch vs reference (config 2)"

    print("KERNEL_OK")
</pallas_src>

<mosaic_0001>
module attributes {stable_mosaic.version = 11 : i64} {
  func.func @kernel(%arg0: i32, %arg1: memref<1x16x16xf32, #tpu.memory_space<vmem>>, %arg2: memref<1x16x16xf32, #tpu.memory_space<vmem>>) attributes {dimension_semantics = [#tpu.dimension_semantics<parallel>], iteration_bounds = array<i64: 2>, scalar_prefetch = 0 : i64, scratch_operands = 0 : i64, tpu.core_type = #tpu.core_type<tc>, window_params = [{transform_indices = @transform_0, window_bounds = array<i64: 1, 16, 16>}, {transform_indices = @transform_1, window_bounds = array<i64: 1, 16, 16>}]} {
    %c0 = arith.constant 0 : index
    %c0_0 = arith.constant 0 : index
    %c0_1 = arith.constant 0 : index
    %0 = vector.load %arg1[%c0, %c0_0, %c0_1] : memref<1x16x16xf32, #tpu.memory_space<vmem>>, vector<1x16x16xf32>
    %1 = vector.extract_strided_slice %0 {offsets = [0, 0, 14], sizes = [1, 16, 2], strides = [1, 1, 1]} : vector<1x16x16xf32> to vector<1x16x2xf32>
    %2 = vector.extract_strided_slice %0 {offsets = [0, 0, 0], sizes = [1, 16, 2], strides = [1, 1, 1]} : vector<1x16x16xf32> to vector<1x16x2xf32>
    %3 = tpu.concatenate %1, %0, %2 in 2 : vector<1x16x2xf32>, vector<1x16x16xf32>, vector<1x16x2xf32> -> vector<1x16x20xf32>
    %4 = vector.extract_strided_slice %3 {offsets = [0, 0, 0], sizes = [1, 16, 16], strides = [1, 1, 1]} : vector<1x16x20xf32> to vector<1x16x16xf32>
    %5 = vector.extract_strided_slice %3 {offsets = [0, 0, 1], sizes = [1, 16, 16], strides = [1, 1, 1]} : vector<1x16x20xf32> to vector<1x16x16xf32>
    %6 = arith.addf %4, %5 : vector<1x16x16xf32>
    %7 = vector.extract_strided_slice %3 {offsets = [0, 0, 2], sizes = [1, 16, 16], strides = [1, 1, 1]} : vector<1x16x20xf32> to vector<1x16x16xf32>
    %8 = arith.addf %6, %7 : vector<1x16x16xf32>
    %9 = vector.extract_strided_slice %3 {offsets = [0, 0, 3], sizes = [1, 16, 16], strides = [1, 1, 1]} : vector<1x16x20xf32> to vector<1x16x16xf32>
    %10 = arith.addf %8, %9 : vector<1x16x16xf32>
    %11 = vector.extract_strided_slice %3 {offsets = [0, 0, 4], sizes = [1, 16, 16], strides = [1, 1, 1]} : vector<1x16x20xf32> to vector<1x16x16xf32>
    %12 = arith.addf %10, %11 : vector<1x16x16xf32>
    %13 = vector.extract_strided_slice %12 {offsets = [0, 15, 0], sizes = [1, 1, 16], strides = [1, 1, 1]} : vector<1x16x16xf32> to vector<1x1x16xf32>
    %14 = vector.extract_strided_slice %12 {offsets = [0, 0, 0], sizes = [1, 1, 16], strides = [1, 1, 1]} : vector<1x16x16xf32> to vector<1x1x16xf32>
    %15 = tpu.concatenate %13, %12, %14 in 1 : vector<1x1x16xf32>, vector<1x16x16xf32>, vector<1x1x16xf32> -> vector<1x18x16xf32>
    %16 = vector.extract_strided_slice %15 {offsets = [0, 0, 0], sizes = [1, 16, 16], strides = [1, 1, 1]} : vector<1x18x16xf32> to vector<1x16x16xf32>
    %17 = vector.extract_strided_slice %15 {offsets = [0, 1, 0], sizes = [1, 16, 16], strides = [1, 1, 1]} : vector<1x18x16xf32> to vector<1x16x16xf32>
    %18 = arith.addf %16, %17 : vector<1x16x16xf32>
    %19 = vector.extract_strided_slice %15 {offsets = [0, 2, 0], sizes = [1, 16, 16], strides = [1, 1, 1]} : vector<1x18x16xf32> to vector<1x16x16xf32>
    %20 = arith.addf %18, %19 : vector<1x16x16xf32>
    %c0_2 = arith.constant 0 : index
    %c0_3 = arith.constant 0 : index
    %c0_4 = arith.constant 0 : index
    %21 = vector.load %arg2[%c0_2, %c0_3, %c0_4] : memref<1x16x16xf32, #tpu.memory_space<vmem>>, vector<1x16x16xf32>
    tpu.vector_store %arg2[%c0_2, %c0_3, %c0_4], %20 {strides = array<i32>} : memref<1x16x16xf32, #tpu.memory_space<vmem>>, vector<1x16x16xf32>,
    return
  }
  func.func @transform_0(%arg0: i32) -> (i32, i32, i32) {
    %c0_i32 = arith.constant 0 : i32
    %c0_i32_0 = arith.constant 0 : i32
    %c0_i32_1 = arith.constant 0 : i32
    return %arg0, %c0_i32, %c0_i32_0 : i32, i32, i32
  }
  func.func @transform_1(%arg0: i32) -> (i32, i32, i32) {
    %c0_i32 = arith.constant 0 : i32
    %c0_i32_0 = arith.constant 0 : i32
    %c0_i32_1 = arith.constant 0 : i32
    return %arg0, %c0_i32, %c0_i32_0 : i32, i32, i32
  }
}

</mosaic_0001>

<llo_original>
// kernel: tpu_custom_call.1
$region0: #{tpu_custom_call.1}
  #allocation0 [shape = 'u32[]', space=smem, size = 0x4, offset = 0x4, fixed_abs, tag = 'smem constant byte address 0x4 - core index']
  #allocation1 [shape = 'u32[144,128]{1,0:T(1,128)}', space=vmem, size = 0x12000, scoped, tag = 'internal scratch']
  %s0 = inlined_call_operand.hbm [shape: f32[2,16,16], index: 0, kind: input, shape index: {}]
  %s1 = inlined_call_operand.hbm [shape: f32[2,16,16], index: 1, kind: output, shape index: {}]
  %s2 = sld [smem:[#allocation0]]
  $region41: #{tpu_custom_call.1} parent=0
    _
  %s4 = ssub.s32 1, %s2
  %s5 = scalar_select 0, %s4, %s2
  $region1: #{tpu_custom_call.1} parent=0
    #allocation2 [shape = 'u8[16384]{0}', space=vmem, size = 0x4000, scoped, tag = 'input window, operand 0']
    #allocation3 [shape = 's32[2]{0}', space=sflag, size = 0x8, scoped, tag = 'scoped memory for tpu_custom_call.1']
    #allocation4 [shape = 's32[2]{0}', space=sflag, size = 0x8, scoped, tag = 'scoped memory for tpu_custom_call.1']
    #allocation5 [shape = 'u8[16384]{0}', space=vmem, size = 0x4000, scoped, tag = 'output window, operand 0']
    %6 = vsyncpa [#allocation3], 0
    %s7 = scalar_lea.sflag [#allocation3], 1
    %8 = vsyncpa %s7, 0
    %9 = vsyncpa [#allocation4], 0
    %s10 = scalar_lea.sflag [#allocation4], 1
    %11 = vsyncpa %s10, 0
    loop: start=0, step=1, limit=4
    $region2: #{tpu_custom_call.1} parent=1 // loop_pre_header
      _
    $region3: #{tpu_custom_call.1} parent=1 // loop_header
      %s13 = sphi 0, %s17
      %p14 = scmp.ge.s32.totalorder %s13, 4
      %s23 = sphi 0, %s25
      %s26 = sphi 0, %s23
      %s27 = sphi 0, %s26
      %s43 = sphi 0, %s27
      %s49 = sphi 0, %s51
      %s52 = sphi 0, %s49
      %s53 = sphi 0, %s52
      %s69 = sphi 0, %s53
    $region4: #{tpu_custom_call.1} parent=1 // loop_header_branch
      %16 = sbr.rel (%p14) target = $region8
    $region5: #{tpu_custom_call.1} parent=1 // loop_body
      %s18 = ssub.s32 %s13, 1
      %s19 = ssub.s32 %s13, 2
      %s20 = sadd.s32 %s13, 1
      %s21 = ssub.s32 %s13, %s20
      %p22 = scmp.eq.s32.totalorder %s21, 0
      %s24 = sadd.s32 %s23, 1
      %s25 = scalar_select %p22, %s23, %s24
      %p28 = pneg %p22
      %p29 = scmp.eq.s32.totalorder %s13, 1
      %p30 = por %p28, %p29
      %p31 = scmp.ne.s32.totalorder %s23, %s26
      %p32 = scmp.eq.s32.totalorder %s13, 0
      %p33 = por %p31, %p32
      %p34 = scmp.ne.s32.totalorder %s23, %s26
      %p35 = scmp.eq.s32.totalorder %s18, 1
      %p36 = por %p34, %p35
      %p37 = scmp.ne.s32.totalorder %s26, %s27
      %p38 = scmp.eq.s32.totalorder %s18, 0
      %p39 = por %p37, %p38
      %p40 = scmp.ne.s32.totalorder %s26, %s27
      %p41 = scmp.eq.s32.totalorder %s19, 1
      %p42 = por %p40, %p41
      %p44 = scmp.ne.s32.totalorder %s27, %s43
      %p45 = scmp.eq.s32.totalorder %s19, 0
      %p46 = por %p44, %p45
      %s47 = ssub.s32 %s13, %s20
      %p48 = scmp.eq.s32.totalorder %s47, 0
      %s50 = sadd.s32 %s49, 1
      %s51 = scalar_select %p48, %s49, %s50
      %p54 = pneg %p48
      %p55 = scmp.eq.s32.totalorder %s13, 1
      %p56 = por %p54, %p55
      %p57 = scmp.ne.s32.totalorder %s49, %s52
      %p58 = scmp.eq.s32.totalorder %s13, 0
      %p59 = por %p57, %p58
      %p60 = scmp.ne.s32.totalorder %s49, %s52
      %p61 = scmp.eq.s32.totalorder %s18, 1
      %p62 = por %p60, %p61
      %p63 = scmp.ne.s32.totalorder %s52, %s53
      %p64 = scmp.eq.s32.totalorder %s18, 0
      %p65 = por %p63, %p64
      %p66 = scmp.ne.s32.totalorder %s52, %s53
      %p67 = scmp.eq.s32.totalorder %s19, 1
      %p68 = por %p66, %p67
      %p70 = scmp.ne.s32.totalorder %s53, %s69
      %p71 = scmp.eq.s32.totalorder %s19, 0
      %p72 = por %p70, %p71
      %p73 = scmp.le.s32.totalorder 1, %s13
      %p74 = scmp.lt.s32.totalorder %s13, 3
      %p75 = pnand %p73, %p74
      %p76 = pneg %p75
      // Predicated region
      $region9: #{tpu_custom_call.1} parent=5 // pred_check
        _
      $region10: #{tpu_custom_call.1} parent=5 // pred_check_branch
        %78 = sbr.rel (%p75) target = $region12
      $region11: #{tpu_custom_call.1} parent=5 // pred_region
        %s79 = ssub.s32 %s13, 1
      $region12: #{tpu_custom_call.1} parent=5 // pred_fallthru
        _
      %p80 = scmp.lt.s32.totalorder %s13, 2
      // Predicated region
      $region13: #{tpu_custom_call.1} parent=5 // pred_check
        %p81 = pneg %p80
      $region14: #{tpu_custom_call.1} parent=5 // pred_check_branch
        %83 = sbr.rel (%p81) target = $region16
      $region15: #{tpu_custom_call.1} parent=5 // pred_region
        // Predicated region
        $region17: #{tpu_custom_call.1} parent=15 // pred_check
          %p84 = pneg %p33
        $region18: #{tpu_custom_call.1} parent=15 // pred_check_branch
          %86 = sbr.rel (%p84) target = $region20
        $region19: #{tpu_custom_call.1} parent=15 // pred_region
          %s87 = sand.u32 %s23, 1
          %s88 = scalar_lea.sflag [#allocation3], %s87
          %s89 = sand.u32 %s23, 1
          %s90 = smul.addr %s89, 16
          %s91 = scalar_lea.vmem [#allocation2], %s90
          %s93 = ssub.s32 256, 256
          %94 = vsyncadd %s88, %s93
          %s95 = smul.addr %s13, 2
          %s96 = smul.addr %s95, 128
          %s97 = scalar_lea.hbm %s0, %s96
          %s98 = sshll.u32 %s91, 4
          %s99 = int_to_ptr.vmem [resolvable:$true] %s98
          %104 = dma.hbm_to_vmem [thread:$0]  %s97, 256, %s99, %s88, 128, 128, 8
        $region20: #{tpu_custom_call.1} parent=15 // pred_fallthru
          _
      $region16: #{tpu_custom_call.1} parent=5 // pred_fallthru
        _
      %p105 = scmp.le.s32.totalorder 1, %s13
      %p106 = scmp.lt.s32.totalorder %s13, 3
      %p107 = pnand %p105, %p106
      %p108 = pneg %p107
      // Predicated region
      $region21: #{tpu_custom_call.1} parent=5 // pred_check
        _
      $region22: #{tpu_custom_call.1} parent=5 // pred_check_branch
        %110 = sbr.rel (%p107) target = $region24
      $region23: #{tpu_custom_call.1} parent=5 // pred_region
        %s111 = ssub.s32 %s13, 1
        %s112 = sand.u32 %s26, 1
        %s113 = scalar_lea.sflag [#allocation3], %s112
        %s114 = sand.u32 %s26, 1
        %s115 = smul.addr %s114, 16
        %s116 = scalar_lea.vmem [#allocation2], %s115
        // Predicated region
        $region25: #{tpu_custom_call.1} parent=23 // pred_check
          %p117 = pneg %p39
        $region26: #{tpu_custom_call.1} parent=23 // pred_check_branch
          %119 = sbr.rel (%p117) target = $region28
        $region27: #{tpu_custom_call.1} parent=23 // pred_region
          %120 = dma.done %s113, 256
        $region28: #{tpu_custom_call.1} parent=23 // pred_fallthru
          _
        %s121 = sand.u32 %s26, 1
        %s122 = scalar_lea.sflag [#allocation3], %s121
        %s123 = sand.u32 %s26, 1
        %s124 = smul.addr %s123, 16
        %s125 = scalar_lea.vmem [#allocation2], %s124
        %p126 = pneg %p39
        %p127 = pneg %p36
        %p128 = pneg %p65
        %p129 = pneg %p62
        %s130 = sand.u32 %s52, 1
        %s131 = scalar_lea.sflag [#allocation4], %s130
        %s132 = sand.u32 %s52, 1
        %s133 = smul.addr %s132, 16
        %s134 = scalar_lea.vmem [#allocation5], %s133
        %v135 = vld [vmem:[%s116] sm:$0xff]
        %v136 = vld [vmem:[%s116 + $0x8] sm:$0xff]
        %139 = vrot.lane.b32.xlu0 %v135, 114
        %v140 = vpop.permute.xlu0 %139
        %141 = vrot.lane.b32.xlu0 %v136, 114
        %v142 = vpop.permute.xlu0 %141
        %145 = vrot.lane.b32.xlu0 %v135, 2
        %v146 = vpop.permute.xlu0 %145
        %147 = vrot.lane.b32.xlu0 %v136, 2
        %v148 = vpop.permute.xlu0 %147
        %151 = vrot.lane.b32.xlu0 %v135, 18
        %v152 = vpop.permute.xlu0 %151
        %153 = vrot.lane.b32.xlu0 %v136, 18
        %v154 = vpop.permute.xlu0 %153
        %vm157 = vcmask 15360
        %v158 = vsel %vm157, %v140, %v146
        %v159 = vsel %vm157, %v142, %v148
        %vm160 = vcmask 146432
        %v161 = vsel %vm160, %v158, %v152
        %v162 = vsel %vm160, %v159, %v154
        %165 = vrot.lane.b32.xlu0 %v161, 127
        %v166 = vpop.permute.xlu0 %165
        %167 = vrot.lane.b32.xlu0 %v162, 127
        %v168 = vpop.permute.xlu0 %167
        %v171 = vadd.f32 %v161, %v166
        %v172 = vadd.f32 %v162, %v168
        %173 = vrot.lane.b32.xlu0 %v161, 126
        %v174 = vpop.permute.xlu0 %173
        %175 = vrot.lane.b32.xlu0 %v162, 126
        %v176 = vpop.permute.xlu0 %175
        %v179 = vadd.f32 %v171, %v174
        %v180 = vadd.f32 %v172, %v176
        %181 = vrot.lane.b32.xlu0 %v161, 125
        %v182 = vpop.permute.xlu0 %181
        %183 = vrot.lane.b32.xlu0 %v162, 125
        %v184 = vpop.permute.xlu0 %183
        %v187 = vadd.f32 %v179, %v182
        %v188 = vadd.f32 %v180, %v184
        %189 = vrot.lane.b32.xlu0 %v161, 124
        %v190 = vpop.permute.xlu0 %189
        %191 = vrot.lane.b32.xlu0 %v162, 124
        %v192 = vpop.permute.xlu0 %191
        %v195 = vadd.f32 %v187, %v190
        %v196 = vadd.f32 %v188, %v192
        %v198 = vrot.slane %v196, 7
        %vm201 = vcmask 1040384
        %v202 = vrot.slane %v195, 7
        %v203 = vsel %vm201, %v202, %v198
        %v206 = vsel %vm201, %v198, %v202
        %vm208 = vcmask 1046528
        %v209 = vrot.slane %v206, 1
        %v210 = vrot.slane %v203, 1
        %v211 = vsel %vm208, %v209, %v210
        %v212 = vsel %vm208, %v210, %v209
        %v215 = vadd.f32 %v206, %v211
        %v216 = vadd.f32 %v203, %v212
        %vm217 = vcmask 1045504
        %v218 = vrot.slane %v206, 2
        %v219 = vrot.slane %v203, 2
        %v220 = vsel %vm217, %v218, %v219
        %v221 = vsel %vm217, %v219, %v218
        %v224 = vadd.f32 %v215, %v220
        %v225 = vadd.f32 %v216, %v221
        %vm226 = vcmask 130048
        %227 = vst.msk [vmem:[%s134] sm:$0xff] %vm226, %v224
        %228 = vst.msk [vmem:[%s134 + $0x8] sm:$0xff] %vm226, %v225
        %s229 = sand.u32 %s52, 1
        %s230 = scalar_lea.sflag [#allocation4], %s229
        %s231 = sand.u32 %s52, 1
        %s232 = smul.addr %s231, 16
        %s233 = scalar_lea.vmem [#allocation5], %s232
        // Predicated region
        $region29: #{tpu_custom_call.1} parent=23 // pred_check
          %p234 = pneg %p62
        $region30: #{tpu_custom_call.1} parent=23 // pred_check_branch
          %236 = sbr.rel (%p234) target = $region32
        $region31: #{tpu_custom_call.1} parent=23 // pred_region
          %s238 = ssub.s32 256, 256
          %239 = vsyncadd %s230, %s238
          %s240 = smul.addr %s18, 2
          %s241 = smul.addr %s240, 128
          %s242 = scalar_lea.hbm %s1, %s241
          %s243 = sshll.u32 %s233, 4
          %s244 = int_to_ptr.vmem [resolvable:$true] %s243
          %249 = dma.vmem_to_hbm [thread:$0]  %s244, 256, %s242, %s230, 128, 128, 8
        $region32: #{tpu_custom_call.1} parent=23 // pred_fallthru
          _
      $region24: #{tpu_custom_call.1} parent=5 // pred_fallthru
        _
      %p250 = scmp.le.s32.totalorder 2, %s13
      // Predicated region
      $region33: #{tpu_custom_call.1} parent=5 // pred_check
        %p251 = pneg %p250
      $region34: #{tpu_custom_call.1} parent=5 // pred_check_branch
        %253 = sbr.rel (%p251) target = $region36
      $region35: #{tpu_custom_call.1} parent=5 // pred_region
        %s254 = ssub.s32 %s13, 2
        // Predicated region
        $region37: #{tpu_custom_call.1} parent=35 // pred_check
          %p255 = pneg %p68
        $region38: #{tpu_custom_call.1} parent=35 // pred_check_branch
          %257 = sbr.rel (%p255) target = $region40
        $region39: #{tpu_custom_call.1} parent=35 // pred_region
          %s258 = sand.u32 %s53, 1
          %s259 = scalar_lea.sflag [#allocation4], %s258
          %s260 = sand.u32 %s53, 1
          %s261 = smul.addr %s260, 16
          %s262 = scalar_lea.vmem [#allocation5], %s261
          %263 = dma.done %s259, 256
        $region40: #{tpu_custom_call.1} parent=35 // pred_fallthru
          _
      $region36: #{tpu_custom_call.1} parent=5 // pred_fallthru
        _
    $region6: #{tpu_custom_call.1} parent=1 // loop_footer
      %s17 = sadd.s32 1, %s13
    $region7: #{tpu_custom_call.1} parent=1 // loop_footer_branch
      %12 = sbr.rel target = $region3
    $region8: #{tpu_custom_call.1} parent=1 // loop_exit
      _
    %264 = vsyncpa [#allocation3], 1
    %s265 = scalar_lea.sflag [#allocation3], 1
    %266 = vsyncpa %s265, 1
    %267 = vsyncpa [#allocation4], 1
    %s268 = scalar_lea.sflag [#allocation4], 1
    %269 = vsyncpa %s268, 1

</llo_original>
